<compile_context>
chip_gen: v6e
topology: v6e:2x2x1
jax: 0.10.0
libtpu: 0.0.40
codegen_flags: <defaults>
</compile_context>

<pallas_src>
import functools

import jax
import jax.numpy as jnp
import numpy as np
from jax.experimental import pallas as pl
from jax.experimental.pallas import tpu as pltpu


def _fsq_kernel(z_ref, wc_ref, bc_ref, we_ref, be_ref, consts_ref,
                zq_ref, err_ref, *, n_valid_rows, tn_rows):
    """One grid step processes a (tn_rows, Lin) lane-folded slab of rows.

    consts_ref rows: 0 = 1/T, 1 = half_l, 2 = offset, 3 = shift,
    4 = T/half_width (each tiled `fold` times along the lane dim).
    err_ref is a per-block (1, 1, 1) partial sum of (zc - codes)^2 over valid rows.
    """
    i = pl.program_id(0)

    z = z_ref[...].astype(jnp.float32)                    # (tn, Lin) lane-dense
    c = consts_ref[...]                                   # (8, Ldim) f32
    inv_t = c[0:1, :]
    half_l = c[1:2, :]
    offset = c[2:3, :]
    shift = c[3:4, :]
    scale = c[4:5, :]                                     # T / half_width

    # compress: block-diagonal Linear (Lin -> Ldim)
    zc = jnp.dot(z, wc_ref[...], preferred_element_type=jnp.float32) + bc_ref[...]

    # bound + round (forward of round_ste) + rescale back through T
    z_bound = jnp.tanh(zc * inv_t + shift) * half_l - offset
    codes = jnp.round(z_bound) * scale

    # per-block partial sum of squared quantization error
    diff = zc - codes
    d2 = diff * diff
    if n_valid_rows is None:                              # static: grid divides rows
        err_ref[...] = jnp.sum(d2).reshape(1, 1, 1)
    else:                                                 # ragged tail: mask last block only
        last = pl.num_programs(0) - 1

        @pl.when(i != last)
        def _():
            err_ref[...] = jnp.sum(d2).reshape(1, 1, 1)

        @pl.when(i == last)
        def _():
            row_ids = i * tn_rows + jax.lax.broadcasted_iota(
                jnp.int32, (tn_rows, 1), 0)
            err_ref[...] = jnp.sum(
                jnp.where(row_ids < n_valid_rows, d2, 0.0)).reshape(1, 1, 1)

    # expand: block-diagonal Linear (Ldim -> Lin); store in caller's dtype
    zq = jnp.dot(codes, we_ref[...], preferred_element_type=jnp.float32) + be_ref[...]
    zq_ref[...] = zq.astype(zq_ref.dtype)


def _pick_fold(n_rows, c_in):
    """Pick a small fold f with f | n_rows so the folded lane dim is dense."""
    if c_in % 128 == 0:
        return 1
    for f in (2, 4, 8):                       # smallest fold giving a 128-multiple
        if n_rows % f == 0 and (f * c_in) % 128 == 0:
            return f
    for f in (4, 2):                          # fallback: still densify the lanes
        if n_rows % f == 0 and f * c_in <= 512:
            return f
    return 1


def fsq_trainable_t_forward(z, wc, bc, we, be, t_raw, levels, *,
                            rows_per_block=8192, fold=None):
    """z: (B, H, C_in).  wc: (C_in, C_dim), bc: (C_dim,), we: (C_dim, C_in),
    be: (C_in,), t_raw: (C_dim,).  Returns (z_q (B,H,C_in) in z.dtype, qerr f32)."""
    B, H, C_in = z.shape
    C_dim = len(levels)
    N = B * H
    f32 = jnp.float32

    if fold is None:
        fold = _pick_fold(N, C_in)
    assert N % fold == 0, "fold must divide B*H"
    Lin, Ldim, Nf = fold * C_in, fold * C_dim, N // fold

    # per-dim quantizer constants (derived from static `levels` and trainable T)
    eps = 0.001
    levels_i = jnp.asarray(levels, jnp.int32)
    levels_f = jnp.asarray(levels, f32)
    T = jax.nn.softplus(t_raw.astype(f32))                       # get_T()
    half_l = (levels_f - 1.0) * (1.0 + eps) / 2.0
    offset = jnp.where(levels_i % 2 == 0, 0.5, 0.0).astype(f32)
    shift = jnp.arctanh(offset / half_l)
    half_w = (levels_i // 2).astype(f32)

    def til(v):                                                  # (C_dim,) -> (Ldim,)
        return jnp.tile(v, (fold,))

    # pack the 5 per-channel constant rows into one (8, Ldim) sublane-aligned slab
    consts = jnp.zeros((8, Ldim), f32)
    consts = (consts.at[0].set(til(1.0 / T)).at[1].set(til(half_l))
                    .at[2].set(til(offset)).at[3].set(til(shift))
                    .at[4].set(til(T / half_w)))

    # block-diagonal (kron) weights so all folded channels go through one matmul
    eye = jnp.eye(fold, dtype=f32)
    wc_f = jnp.kron(eye, wc.astype(f32))                         # (Lin, Ldim)
    we_f = jnp.kron(eye, we.astype(f32))                         # (Ldim, Lin)
    bc_f = jnp.tile(bc.astype(f32), (fold,)).reshape(1, Ldim)
    be_f = jnp.tile(be.astype(f32), (fold,)).reshape(1, Lin)

    # lane-folded view of z (free, contiguous in row-major HBM), caller dtype kept
    zf = z.reshape(Nf, Lin)

    # row tiling over folded rows; ragged tail handled in-kernel (no pad / slice)
    def _rup(x, m):
        return ((x + m - 1) // m) * m

    tn_f = max(8, min(_rup(max(rows_per_block // fold, 1), 8), _rup(Nf, 8)))
    grid_n = (Nf + tn_f - 1) // tn_f
    ragged = (grid_n * tn_f != Nf)

    kernel = functools.partial(_fsq_kernel,
                               n_valid_rows=(Nf if ragged else None),
                               tn_rows=tn_f)

    zq_flat, err_parts = pl.pallas_call(
        kernel,
        out_shape=(jax.ShapeDtypeStruct((Nf, Lin), z.dtype),
                   jax.ShapeDtypeStruct((grid_n, 1, 1), f32)),
        grid_spec=pltpu.PrefetchScalarGridSpec(
            num_scalar_prefetch=0,
            grid=(grid_n,),
            in_specs=[
                pl.BlockSpec((tn_f, Lin), lambda i: (i, 0)),     # folded z rows
                pl.BlockSpec((Lin, Ldim), lambda i: (0, 0)),     # compress W (block-diag)
                pl.BlockSpec((1, Ldim), lambda i: (0, 0)),       # compress b (tiled)
                pl.BlockSpec((Ldim, Lin), lambda i: (0, 0)),     # expand W (block-diag)
                pl.BlockSpec((1, Lin), lambda i: (0, 0)),        # expand b (tiled)
                pl.BlockSpec((8, Ldim), lambda i: (0, 0)),       # packed constants
            ],
            out_specs=[
                pl.BlockSpec((tn_f, Lin), lambda i: (i, 0)),     # folded z_q rows
                pl.BlockSpec((1, 1, 1), lambda i: (i, 0, 0)),    # per-block err sums
            ],
        ),
        compiler_params=pltpu.CompilerParams(
            # no cross-step carry -> fully parallel grid (megacore on v7x)
            dimension_semantics=("parallel",),
            vmem_limit_bytes=32 * 1024 * 1024),
    )(zf, wc_f, bc_f, we_f, be_f, consts)

    z_q = zq_flat.reshape(B, H, C_in)
    q_err = jnp.sum(err_parts) / float(N * C_dim)
    return z_q, q_err


def _reference(z, wc, bc, we, be, t_raw, levels):
    eps = 0.001
    levels_f = jnp.asarray(levels, jnp.float32)
    T = jax.nn.softplus(t_raw)
    half_l = (levels_f - 1.0) * (1.0 + eps) / 2.0
    offset = jnp.where(jnp.asarray(levels, jnp.int32) % 2 == 0, 0.5, 0.0)
    shift = jnp.arctanh(offset / half_l)
    half_w = (jnp.asarray(levels, jnp.int32) // 2).astype(jnp.float32)
    zc = z @ wc + bc
    zb = jnp.tanh(zc / T + shift) * half_l - offset
    codes = jnp.round(zb) / half_w * T
    qerr = jnp.mean((zc - codes) ** 2)
    zq = codes @ we + be
    return zq, qerr


if __name__ == "__main__":
    channels_in, channels_dim = 32, 3
    levels = [15, 15, 15]

    key = jax.random.PRNGKey(0)
    k_z, k_wc, k_bc, k_we, k_be, k_z2, k_z3 = jax.random.split(key, 7)

    # deterministic synthetic "Linear" parameters (JAX layout = (in, out))
    wc = jax.random.normal(k_wc, (channels_in, channels_dim), dtype=jnp.float32) * 0.1
    bc = jax.random.normal(k_bc, (channels_dim,), dtype=jnp.float32) * 0.1
    we = jax.random.normal(k_we, (channels_dim, channels_in), dtype=jnp.float32) * 0.1
    be = jax.random.normal(k_be, (channels_in,), dtype=jnp.float32) * 0.1
    t_raw = jnp.zeros((channels_dim,), dtype=jnp.float32)   # T init = 0 -> softplus(0)=ln 2

    # --- test 1: module-spec shape (fold=4 -> 128 lanes, single block) ---
    B, H = 2, 8
    z = jax.random.normal(k_z, (B, H, channels_in), dtype=jnp.float32)
    z_q, q_err = fsq_trainable_t_forward(z, wc, bc, we, be, t_raw, levels)
    jax.block_until_ready((z_q, q_err))
    zq_ref, qerr_ref = _reference(z, wc, bc, we, be, t_raw, levels)
    np.testing.assert_allclose(np.asarray(z_q), np.asarray(zq_ref), rtol=1e-5, atol=1e-5)
    np.testing.assert_allclose(np.asarray(q_err), np.asarray(qerr_ref), rtol=1e-5, atol=1e-6)

    # --- test 2: multi-block grid + masked ragged tail (N=150, fold=2, 3 blocks) ---
    B2, H2 = 3, 50
    z_b = jax.random.normal(k_z2, (B2, H2, channels_in), dtype=jnp.float32)
    z_qb, q_errb = fsq_trainable_t_forward(z_b, wc, bc, we, be, t_raw, levels,
                                           rows_per_block=64)
    jax.block_until_ready((z_qb, q_errb))
    zq_refb, qerr_refb = _reference(z_b, wc, bc, we, be, t_raw, levels)
    np.testing.assert_allclose(np.asarray(z_qb), np.asarray(zq_refb), rtol=1e-5, atol=1e-5)
    np.testing.assert_allclose(np.asarray(q_errb), np.asarray(qerr_refb), rtol=1e-5, atol=1e-6)

    # --- test 3: bf16 I/O path (no wrapper upcast; z_q returned in bf16) ---
    B3, H3 = 2, 32
    z_c = jax.random.normal(k_z3, (B3, H3, channels_in), dtype=jnp.float32)
    z_c16 = z_c.astype(jnp.bfloat16)
    z_qc, q_errc = fsq_trainable_t_forward(z_c16, wc, bc, we, be, t_raw, levels)
    jax.block_until_ready((z_qc, q_errc))
    zq_refc, qerr_refc = _reference(z_c16.astype(jnp.float32), wc, bc, we, be, t_raw, levels)
    assert z_qc.dtype == jnp.bfloat16
    np.testing.assert_allclose(np.asarray(z_qc.astype(jnp.float32)), np.asarray(zq_refc),
                               rtol=2e-2, atol=2e-2)
    np.testing.assert_allclose(np.asarray(q_errc), np.asarray(qerr_refc),
                               rtol=1e-4, atol=1e-5)

    print("KERNEL_OK")
</pallas_src>

<mosaic_0001>
module attributes {stable_mosaic.version = 11 : i64} {
  func.func @_fsq_kernel(%arg0: i32, %arg1: memref<8x128xf32, #tpu.memory_space<vmem>>, %arg2: memref<128x12xf32, #tpu.memory_space<vmem>>, %arg3: memref<1x12xf32, #tpu.memory_space<vmem>>, %arg4: memref<12x128xf32, #tpu.memory_space<vmem>>, %arg5: memref<1x128xf32, #tpu.memory_space<vmem>>, %arg6: memref<8x12xf32, #tpu.memory_space<vmem>>, %arg7: memref<8x128xf32, #tpu.memory_space<vmem>>, %arg8: memref<1x1x1xf32, #tpu.memory_space<vmem>>) attributes {dimension_semantics = [#tpu.dimension_semantics<parallel>], iteration_bounds = array<i64: 1>, scalar_prefetch = 0 : i64, scratch_operands = 0 : i64, tpu.core_type = #tpu.core_type<tc>, window_params = [{transform_indices = @transform_0, window_bounds = array<i64: 8, 128>}, {pipeline_mode = #tpu.pipeline_mode<synchronous>, transform_indices = @transform_1, window_bounds = array<i64: 128, 12>}, {pipeline_mode = #tpu.pipeline_mode<synchronous>, transform_indices = @transform_2, window_bounds = array<i64: 1, 12>}, {pipeline_mode = #tpu.pipeline_mode<synchronous>, transform_indices = @transform_3, window_bounds = array<i64: 12, 128>}, {pipeline_mode = #tpu.pipeline_mode<synchronous>, transform_indices = @transform_4, window_bounds = array<i64: 1, 128>}, {pipeline_mode = #tpu.pipeline_mode<synchronous>, transform_indices = @transform_5, window_bounds = array<i64: 8, 12>}, {transform_indices = @transform_6, window_bounds = array<i64: 8, 128>}, {transform_indices = @transform_7, window_bounds = array<i64: 1, 1, 1>}]} {
    %c0 = arith.constant 0 : index
    %c0_0 = arith.constant 0 : index
    %0 = vector.load %arg1[%c0, %c0_0] : memref<8x128xf32, #tpu.memory_space<vmem>>, vector<8x128xf32>
    %c0_1 = arith.constant 0 : index
    %c0_2 = arith.constant 0 : index
    %1 = vector.load %arg6[%c0_1, %c0_2] : memref<8x12xf32, #tpu.memory_space<vmem>>, vector<8x12xf32>
    %2 = vector.extract_strided_slice %1 {offsets = [0, 0], sizes = [1, 12], strides = [1, 1]} : vector<8x12xf32> to vector<1x12xf32>
    %3 = vector.extract_strided_slice %1 {offsets = [1, 0], sizes = [1, 12], strides = [1, 1]} : vector<8x12xf32> to vector<1x12xf32>
    %4 = vector.extract_strided_slice %1 {offsets = [2, 0], sizes = [1, 12], strides = [1, 1]} : vector<8x12xf32> to vector<1x12xf32>
    %5 = vector.extract_strided_slice %1 {offsets = [3, 0], sizes = [1, 12], strides = [1, 1]} : vector<8x12xf32> to vector<1x12xf32>
    %6 = vector.extract_strided_slice %1 {offsets = [4, 0], sizes = [1, 12], strides = [1, 1]} : vector<8x12xf32> to vector<1x12xf32>
    %c0_3 = arith.constant 0 : index
    %c0_4 = arith.constant 0 : index
    %7 = vector.load %arg2[%c0_3, %c0_4] : memref<128x12xf32, #tpu.memory_space<vmem>>, vector<128x12xf32>
    %cst = arith.constant dense<0.000000e+00> : vector<8x12xf32>
    %8 = tpu.matmul %0, %7, %cst {dimension_numbers = #tpu.dot_dimension_numbers<[1], [0], [0], [1], [0, 0, 1, 1], [], []>} : vector<8x128xf32>, vector<128x12xf32>, vector<8x12xf32> -> vector<8x12xf32>
    %c0_5 = arith.constant 0 : index
    %c0_6 = arith.constant 0 : index
    %9 = vector.load %arg3[%c0_5, %c0_6] : memref<1x12xf32, #tpu.memory_space<vmem>>, vector<1x12xf32>
    %10 = vector.broadcast %9 : vector<1x12xf32> to vector<8x12xf32>
    %11 = arith.addf %8, %10 : vector<8x12xf32>
    %12 = vector.broadcast %2 : vector<1x12xf32> to vector<8x12xf32>
    %13 = arith.mulf %11, %12 : vector<8x12xf32>
    %14 = vector.broadcast %5 : vector<1x12xf32> to vector<8x12xf32>
    %15 = arith.addf %13, %14 : vector<8x12xf32>
    %16 = math.tanh %15 : vector<8x12xf32>
    %17 = vector.broadcast %3 : vector<1x12xf32> to vector<8x12xf32>
    %18 = arith.mulf %16, %17 : vector<8x12xf32>
    %19 = vector.broadcast %4 : vector<1x12xf32> to vector<8x12xf32>
    %20 = arith.subf %18, %19 : vector<8x12xf32>
    %21 = math.roundeven %20 : vector<8x12xf32>
    %22 = vector.broadcast %6 : vector<1x12xf32> to vector<8x12xf32>
    %23 = arith.mulf %21, %22 : vector<8x12xf32>
    %24 = arith.subf %11, %23 : vector<8x12xf32>
    %25 = arith.mulf %24, %24 : vector<8x12xf32>
    %c0_i32 = arith.constant 0 : i32
    %26 = arith.cmpi ne, %arg0, %c0_i32 : i32
    %27 = arith.extui %26 : i1 to i32
    %c0_i32_7 = arith.constant 0 : i32
    %28 = arith.cmpi ne, %27, %c0_i32_7 : i32
    scf.if %28 {
      %38 = vector.shape_cast %25 : vector<8x12xf32> to vector<1x8x12xf32>
      %cst_17 = arith.constant dense<0.000000e+00> : vector<1xf32>
      %39 = vector.multi_reduction <add>, %38, %cst_17 [1, 2] : vector<1x8x12xf32> to vector<1xf32>
      %40 = vector.shape_cast %39 : vector<1xf32> to vector<1x1x1xf32>
      %41 = vector.extract %40[0, 0, 0] : f32 from vector<1x1x1xf32>
      %42 = vector.broadcast %41 : f32 to vector<1x1x1xf32>
      %c0_18 = arith.constant 0 : index
      %c0_19 = arith.constant 0 : index
      %c0_20 = arith.constant 0 : index
      %43 = vector.load %arg8[%c0_18, %c0_19, %c0_20] : memref<1x1x1xf32, #tpu.memory_space<vmem>>, vector<1x1x1xf32>
      tpu.vector_store %arg8[%c0_18, %c0_19, %c0_20], %42 {strides = array<i32>} : memref<1x1x1xf32, #tpu.memory_space<vmem>>, vector<1x1x1xf32>,
    } else {
    }
    %c0_i32_8 = arith.constant 0 : i32
    %29 = arith.cmpi eq, %arg0, %c0_i32_8 : i32
    %30 = arith.extui %29 : i1 to i32
    %c0_i32_9 = arith.constant 0 : i32
    %31 = arith.cmpi ne, %30, %c0_i32_9 : i32
    scf.if %31 {
      %c8_i32 = arith.constant 8 : i32
      %38 = arith.muli %arg0, %c8_i32 : i32
      %39 = tpu.iota {dimensions = array<i32: 0>} : vector<8x1xi32>
      %40 = vector.broadcast %38 : i32 to vector<8x1xi32>
      %41 = arith.addi %40, %39 : vector<8x1xi32>
      %c4_i32 = arith.constant 4 : i32
      %42 = vector.broadcast %c4_i32 : i32 to vector<8x1xi32>
      %43 = arith.cmpi slt, %41, %42 : vector<8x1xi32>
      %cst_17 = arith.constant 0.000000e+00 : f32
      %44 = vector.shape_cast %43 : vector<8x1xi1> to vector<8x1xi1>
      %45 = vector.broadcast %44 : vector<8x1xi1> to vector<8x12xi1>
      %46 = vector.broadcast %cst_17 : f32 to vector<8x12xf32>
      %47 = arith.select %45, %25, %46 : vector<8x12xi1>, vector<8x12xf32>
      %48 = vector.shape_cast %47 : vector<8x12xf32> to vector<1x8x12xf32>
      %cst_18 = arith.constant dense<0.000000e+00> : vector<1xf32>
      %49 = vector.multi_reduction <add>, %48, %cst_18 [1, 2] : vector<1x8x12xf32> to vector<1xf32>
      %50 = vector.shape_cast %49 : vector<1xf32> to vector<1x1x1xf32>
      %51 = vector.extract %50[0, 0, 0] : f32 from vector<1x1x1xf32>
      %52 = vector.broadcast %51 : f32 to vector<1x1x1xf32>
      %c0_19 = arith.constant 0 : index
      %c0_20 = arith.constant 0 : index
      %c0_21 = arith.constant 0 : index
      %53 = vector.load %arg8[%c0_19, %c0_20, %c0_21] : memref<1x1x1xf32, #tpu.memory_space<vmem>>, vector<1x1x1xf32>
      tpu.vector_store %arg8[%c0_19, %c0_20, %c0_21], %52 {strides = array<i32>} : memref<1x1x1xf32, #tpu.memory_space<vmem>>, vector<1x1x1xf32>,
    } else {
    }
    %c0_10 = arith.constant 0 : index
    %c0_11 = arith.constant 0 : index
    %32 = vector.load %arg4[%c0_10, %c0_11] : memref<12x128xf32, #tpu.memory_space<vmem>>, vector<12x128xf32>
    %cst_12 = arith.constant dense<0.000000e+00> : vector<8x128xf32>
    %33 = tpu.matmul %23, %32, %cst_12 {dimension_numbers = #tpu.dot_dimension_numbers<[1], [0], [0], [1], [0, 0, 1, 1], [], []>} : vector<8x12xf32>, vector<12x128xf32>, vector<8x128xf32> -> vector<8x128xf32>
    %c0_13 = arith.constant 0 : index
    %c0_14 = arith.constant 0 : index
    %34 = vector.load %arg5[%c0_13, %c0_14] : memref<1x128xf32, #tpu.memory_space<vmem>>, vector<1x128xf32>
    %35 = vector.broadcast %34 : vector<1x128xf32> to vector<8x128xf32>
    %36 = arith.addf %33, %35 : vector<8x128xf32>
    %c0_15 = arith.constant 0 : index
    %c0_16 = arith.constant 0 : index
    %37 = vector.load %arg7[%c0_15, %c0_16] : memref<8x128xf32, #tpu.memory_space<vmem>>, vector<8x128xf32>
    tpu.vector_store %arg7[%c0_15, %c0_16], %36 {strides = array<i32>} : memref<8x128xf32, #tpu.memory_space<vmem>>, vector<8x128xf32>,
    return
  }
  func.func @transform_0(%arg0: i32) -> (i32, i32) {
    %c0_i32 = arith.constant 0 : i32
    %c0_i32_0 = arith.constant 0 : i32
    return %arg0, %c0_i32 : i32, i32
  }
  func.func @transform_1(%arg0: i32) -> (i32, i32) {
    %c0_i32 = arith.constant 0 : i32
    %c0_i32_0 = arith.constant 0 : i32
    %c0_i32_1 = arith.constant 0 : i32
    return %c0_i32, %c0_i32_0 : i32, i32
  }
  func.func @transform_2(%arg0: i32) -> (i32, i32) {
    %c0_i32 = arith.constant 0 : i32
    %c0_i32_0 = arith.constant 0 : i32
    %c0_i32_1 = arith.constant 0 : i32
    return %c0_i32, %c0_i32_0 : i32, i32
  }
  func.func @transform_3(%arg0: i32) -> (i32, i32) {
    %c0_i32 = arith.constant 0 : i32
    %c0_i32_0 = arith.constant 0 : i32
    %c0_i32_1 = arith.constant 0 : i32
    return %c0_i32, %c0_i32_0 : i32, i32
  }
  func.func @transform_4(%arg0: i32) -> (i32, i32) {
    %c0_i32 = arith.constant 0 : i32
    %c0_i32_0 = arith.constant 0 : i32
    %c0_i32_1 = arith.constant 0 : i32
    return %c0_i32, %c0_i32_0 : i32, i32
  }
  func.func @transform_5(%arg0: i32) -> (i32, i32) {
    %c0_i32 = arith.constant 0 : i32
    %c0_i32_0 = arith.constant 0 : i32
    %c0_i32_1 = arith.constant 0 : i32
    return %c0_i32, %c0_i32_0 : i32, i32
  }
  func.func @transform_6(%arg0: i32) -> (i32, i32) {
    %c0_i32 = arith.constant 0 : i32
    %c0_i32_0 = arith.constant 0 : i32
    return %arg0, %c0_i32 : i32, i32
  }
  func.func @transform_7(%arg0: i32) -> (i32, i32, i32) {
    %c0_i32 = arith.constant 0 : i32
    %c0_i32_0 = arith.constant 0 : i32
    %c0_i32_1 = arith.constant 0 : i32
    return %arg0, %c0_i32, %c0_i32_0 : i32, i32, i32
  }
}

</mosaic_0001>

<llo_original>
// kernel: tpu_custom_call.1
$region0: #{tpu_custom_call.1}
  #allocation0 [shape = 'u32[]', space=smem, size = 0x4, offset = 0x4, fixed_abs, tag = 'smem constant byte address 0x4 - core index']
  #allocation1 [shape = 'u32[144,128]{1,0:T(1,128)}', space=vmem, size = 0x12000, scoped, tag = 'internal scratch']
  %s0 = inlined_call_operand.vmem [shape: f32[4,128], index: 0, kind: input, shape index: {}]
  %s1 = inlined_call_operand.vmem [shape: f32[128,12], index: 1, kind: input, shape index: {}]
  %s2 = inlined_call_operand.vmem [shape: f32[1,12], index: 2, kind: input, shape index: {}]
  %s3 = inlined_call_operand.vmem [shape: f32[12,128], index: 3, kind: input, shape index: {}]
  %s4 = inlined_call_operand.vmem [shape: f32[1,128], index: 4, kind: input, shape index: {}]
  %s5 = inlined_call_operand.vmem [shape: f32[8,12], index: 5, kind: input, shape index: {}]
  %s6 = inlined_call_operand.hbm [shape: f32[4,128], index: 6, kind: output, shape index: {0}]
  %s7 = inlined_call_operand.hbm [shape: f32[1,1,1], index: 7, kind: output, shape index: {1}]
  %8 = xla_tuple %s6, %s7
  %s9 = sld [smem:[#allocation0]]
  $region50: #{tpu_custom_call.1} parent=0
    _
  %s11 = ssub.s32 1, %s9
  %s12 = scalar_select 0, %s11, %s9
  $region1: #{tpu_custom_call.1} parent=0
    #allocation2 [shape = 'u8[4096]{0}', space=vmem, size = 0x1000, scoped, tag = 'output window, operand 0, single buffered']
    #allocation3 [shape = 's32[1]{0}', space=sflag, size = 0x4, scoped, tag = 'scoped memory for tpu_custom_call.1']
    #allocation4 [shape = 'u8[512]{0}', space=vmem, size = 0x400, scoped, tag = 'output window, operand 1, single buffered']
    #allocation5 [shape = 's32[1]{0}', space=sflag, size = 0x4, scoped, tag = 'scoped memory for tpu_custom_call.1']
    %13 = vsyncpa [#allocation3], 0
    %14 = vsyncpa [#allocation5], 0
    // Predicated region
    $region2: #{tpu_custom_call.1} parent=1 // pred_check
      _
    $region3: #{tpu_custom_call.1} parent=1 // pred_check_branch
      %16 = sbr.rel (0) target = $region5
    $region4: #{tpu_custom_call.1} parent=1 // pred_region
      _
    $region5: #{tpu_custom_call.1} parent=1 // pred_fallthru
      _
    // Predicated region
    $region6: #{tpu_custom_call.1} parent=1 // pred_check
      _
    $region7: #{tpu_custom_call.1} parent=1 // pred_check_branch
      %18 = sbr.rel (0) target = $region9
    $region8: #{tpu_custom_call.1} parent=1 // pred_region
      _
    $region9: #{tpu_custom_call.1} parent=1 // pred_fallthru
      _
    // Predicated region
    $region10: #{tpu_custom_call.1} parent=1 // pred_check
      _
    $region11: #{tpu_custom_call.1} parent=1 // pred_check_branch
      %20 = sbr.rel (0) target = $region13
    $region12: #{tpu_custom_call.1} parent=1 // pred_region
      _
    $region13: #{tpu_custom_call.1} parent=1 // pred_fallthru
      _
    // Predicated region
    $region14: #{tpu_custom_call.1} parent=1 // pred_check
      _
    $region15: #{tpu_custom_call.1} parent=1 // pred_check_branch
      %22 = sbr.rel (0) target = $region17
    $region16: #{tpu_custom_call.1} parent=1 // pred_region
      _
    $region17: #{tpu_custom_call.1} parent=1 // pred_fallthru
      _
    // Predicated region
    $region18: #{tpu_custom_call.1} parent=1 // pred_check
      _
    $region19: #{tpu_custom_call.1} parent=1 // pred_check_branch
      %24 = sbr.rel (0) target = $region21
    $region20: #{tpu_custom_call.1} parent=1 // pred_region
      _
    $region21: #{tpu_custom_call.1} parent=1 // pred_fallthru
      _
    // Predicated region
    $region22: #{tpu_custom_call.1} parent=1 // pred_check
      _
    $region23: #{tpu_custom_call.1} parent=1 // pred_check_branch
      %26 = sbr.rel (0) target = $region25
    $region24: #{tpu_custom_call.1} parent=1 // pred_region
      _
    $region25: #{tpu_custom_call.1} parent=1 // pred_fallthru
      _
    %v27 = vld [vmem:[%s0] sm:$0xff]
    %v28 = vld [vmem:[%s5] sm:$0xff]
    %v29 = vld [vmem:[%s1] sm:$0xff]
    %v30 = vld [vmem:[%s1 + $0x8] sm:$0xff]
    %v31 = vld [vmem:[%s1 + $0x10] sm:$0xff]
    %v32 = vld [vmem:[%s1 + $0x18] sm:$0xff]
    %v33 = vld [vmem:[%s1 + $0x20] sm:$0xff]
    %v34 = vld [vmem:[%s1 + $0x28] sm:$0xff]
    %v35 = vld [vmem:[%s1 + $0x30] sm:$0xff]
    %v36 = vld [vmem:[%s1 + $0x38] sm:$0xff]
    %v37 = vld [vmem:[%s1 + $0x40] sm:$0xff]
    %v38 = vld [vmem:[%s1 + $0x48] sm:$0xff]
    %v39 = vld [vmem:[%s1 + $0x50] sm:$0xff]
    %v40 = vld [vmem:[%s1 + $0x58] sm:$0xff]
    %v41 = vld [vmem:[%s1 + $0x60] sm:$0xff]
    %v42 = vld [vmem:[%s1 + $0x68] sm:$0xff]
    %v43 = vld [vmem:[%s1 + $0x70] sm:$0xff]
    %v44 = vld [vmem:[%s1 + $0x78] sm:$0xff]
    %v45 = vld [vmem:[%s2] sm:$0x1]
    %v47 = vlaneseq
    %v48 = vshrl.u32 %v47, 7
    %v49 = vsub.s32 0, %v48
    %v50 = vrot.slane %v45, %v49
    %52 = vmatprep.subr.mxu0 0.0
    %53 = vmatpush1.msra.mxu0 %v44
    %54 = vmatprep.subr.mxu0 0.0
    %55 = vmatpush1.msra.mxu0 %v43
    %56 = vmatprep.subr.mxu0 0.0
    %57 = vmatpush1.msra.mxu0 %v42
    %58 = vmatprep.subr.mxu0 0.0
    %59 = vmatpush1.msra.mxu0 %v41
    %60 = vmatprep.subr.mxu0 0.0
    %61 = vmatpush1.msra.mxu0 %v40
    %62 = vmatprep.subr.mxu0 0.0
    %63 = vmatpush1.msra.mxu0 %v39
    %64 = vmatprep.subr.mxu0 0.0
    %65 = vmatpush1.msra.mxu0 %v38
    %66 = vmatprep.subr.mxu0 0.0
    %67 = vmatpush1.msra.mxu0 %v37
    %68 = vmatprep.subr.mxu0 0.0
    %69 = vmatpush1.msra.mxu0 %v36
    %70 = vmatprep.subr.mxu0 0.0
    %71 = vmatpush1.msra.mxu0 %v35
    %72 = vmatprep.subr.mxu0 0.0
    %73 = vmatpush1.msra.mxu0 %v34
    %74 = vmatprep.subr.mxu0 0.0
    %75 = vmatpush1.msra.mxu0 %v33
    %76 = vmatprep.subr.mxu0 0.0
    %77 = vmatpush1.msra.mxu0 %v32
    %78 = vmatprep.subr.mxu0 0.0
    %79 = vmatpush1.msra.mxu0 %v31
    %80 = vmatprep.subr.mxu0 0.0
    %81 = vmatpush1.msra.mxu0 %v30
    %82 = vmatprep.subr.mxu0 0.0
    %83 = vmatpush1.msra.mxu0 %v29
    %84 = vmatprep.subr.mxu0 0.0
    %85 = vmatpush2.msra.mxu0 0.0
    %86 = vmatprep.subr.mxu0 0.0
    %87 = vmatpush2.msra.mxu0 0.0
    %88 = vmatprep.subr.mxu0 0.0
    %89 = vmatpush2.msra.mxu0 0.0
    %90 = vmatprep.subr.mxu0 0.0
    %91 = vmatpush2.msra.mxu0 0.0
    %92 = vmatprep.subr.mxu0 0.0
    %93 = vmatpush2.msra.mxu0 0.0
    %94 = vmatprep.subr.mxu0 0.0
    %95 = vmatpush2.msra.mxu0 0.0
    %96 = vmatprep.subr.mxu0 0.0
    %97 = vmatpush2.msra.mxu0 0.0
    %98 = vmatprep.subr.mxu0 0.0
    %99 = vmatpush2.msra.mxu0 0.0
    %100 = vmatprep.subr.mxu0 0.0
    %101 = vmatpush2.msra.mxu0 0.0
    %102 = vmatprep.subr.mxu0 0.0
    %103 = vmatpush2.msra.mxu0 0.0
    %104 = vmatprep.subr.mxu0 0.0
    %105 = vmatpush2.msra.mxu0 0.0
    %106 = vmatprep.subr.mxu0 0.0
    %107 = vmatpush2.msra.mxu0 0.0
    %108 = vmatprep.subr.mxu0 0.0
    %109 = vmatpush2.msra.mxu0 0.0
    %110 = vmatprep.subr.mxu0 0.0
    %111 = vmatpush2.msra.mxu0 0.0
    %112 = vmatprep.subr.mxu0 0.0
    %113 = vmatpush2.msra.mxu0 0.0
    %114 = vmatprep.subr.mxu0 0.0
    %115 = vmatpush2.msra.mxu0 0.0
    %116 = vmatprep.mubr.f32.mxu0 0.0
    %117 = vmatmul.mubr.f32.gmra.mxu0 %v27
    %v118 = vpop.f32.mrf.mxu0
    %v119 = vadd.f32 %v50, %v118
    %v120 = vpop.f32.mrf.mxu0
    %121 = vdwg.mxu0
    %v122 = vlaneseq
    %v123 = vshrl.u32 %v122, 7
    %v124 = vsub.s32 0, %v123
    %v125 = vrot.slane %v28, %v124
    %v126 = vmul.f32 %v119, %v125
    %v127 = vlaneseq
    %v128 = vshrl.u32 %v127, 7
    %v129 = vsub.s32 3, %v128
    %v130 = vrot.slane %v28, %v129
    %v131 = vadd.f32 %v126, %v130
    %v132 = vtanh.pop %v131
    %v133 = vlaneseq
    %v134 = vshrl.u32 %v133, 7
    %v135 = vsub.s32 1, %v134
    %v136 = vrot.slane %v28, %v135
    %v137 = vmul.f32 %v132, %v136
    %v138 = vlaneseq
    %v139 = vshrl.u32 %v138, 7
    %v140 = vsub.s32 2, %v139
    %v141 = vrot.slane %v28, %v140
    %v142 = vsub.f32 %v137, %v141
    %v143 = vround.ne.pseudo %v142
    %v144 = vlaneseq
    %v145 = vshrl.u32 %v144, 7
    %v146 = vsub.s32 4, %v145
    %v147 = vrot.slane %v28, %v146
    %v148 = vmul.f32 %v143, %v147
    %v149 = vsub.f32 %v119, %v148
    %v150 = vmul.f32 %v149, %v149
    %p151 = scmp.ne.s32.totalorder 0, 0
    // Predicated region
    $region26: #{tpu_custom_call.1} parent=1 // pred_check
      %p152 = pneg %p151
    $region27: #{tpu_custom_call.1} parent=1 // pred_check_branch
      %154 = sbr.rel (%p152) target = $region29
    $region28: #{tpu_custom_call.1} parent=1 // pred_region
      %vm155 = vcmask 97280
      %v156 = vsel %vm155, %v150, 0.0
      %157 = vadd.xlane.f32.xlu0 %v156
      %v158 = vpop.xlane.xlu0 %157
      %v159 = vrot.slane %v158, 4
      %v160 = vadd.f32 %v158, %v159
      %v161 = vrot.slane %v160, 2
      %v162 = vadd.f32 %v160, %v161
      %v163 = vrot.slane %v162, 1
      %v164 = vadd.f32 %v162, %v163
      %s165 = vtos %v164
      %v166 = vstv %s165
      %vm167 = vcmask 0
      %168 = vst.msk [vmem:[#allocation4] sm:$0x1] %vm167, %v166
    $region29: #{tpu_custom_call.1} parent=1 // pred_fallthru
      _
    %p169 = scmp.eq.s32.totalorder 0, 0
    // Predicated region
    $region30: #{tpu_custom_call.1} parent=1 // pred_check
      %p170 = pneg %p169
    $region31: #{tpu_custom_call.1} parent=1 // pred_check_branch
      %172 = sbr.rel (%p170) target = $region33
    $region32: #{tpu_custom_call.1} parent=1 // pred_region
      %s173 = smul.u32 0, 8
      %v174 = vlaneseq
      %v175 = vshrl.u32 %v174, 7
      %v176 = vstv %s173
      %v177 = vadd.s32 %v176, %v175
      %vm178 = vcmp.lt.s32.totalorder %v177, 4
      %v179 = vsel %vm178, 1, 0
      %vm180 = vcmp.eq.s32.totalorder %v179, 1
      %v181 = vsel %vm180, %v150, 0.0
      %vm182 = vcmask 97280
      %v183 = vsel %vm182, %v181, 0.0
      %184 = vadd.xlane.f32.xlu0 %v183
      %v185 = vpop.xlane.xlu0 %184
      %v186 = vrot.slane %v185, 4
      %v187 = vadd.f32 %v185, %v186
      %v188 = vrot.slane %v187, 2
      %v189 = vadd.f32 %v187, %v188
      %v190 = vrot.slane %v189, 1
      %v191 = vadd.f32 %v189, %v190
      %s192 = vtos %v191
      %v193 = vstv %s192
      %vm194 = vcmask 0
      %195 = vst.msk [vmem:[#allocation4] sm:$0x1] %vm194, %v193
    $region33: #{tpu_custom_call.1} parent=1 // pred_fallthru
      _
    %v196 = vld [vmem:[%s3] sm:$0xff]
    %v197 = vld [vmem:[%s3 + $0x8] sm:$0xf]
    %v198 = vld [vmem:[%s4] sm:$0x1]
    %v200 = vlaneseq
    %v201 = vshrl.u32 %v200, 7
    %v202 = vsub.s32 0, %v201
    %v203 = vrot.slane %v198, %v202
    %vm205 = vcmask 97280
    %v207 = vsel %vm205, %v148, 0
    %vm209 = vcmask 1043456
    %v211 = vsel %vm209, %v197, 0
    %213 = vmatprep.subr.mxu0 0.0
    %214 = vmatpush1.msra.mxu0 0.0
    %215 = vmatprep.subr.mxu0 0.0
    %216 = vmatpush1.msra.mxu0 0.0
    %217 = vmatprep.subr.mxu0 0.0
    %218 = vmatpush1.msra.mxu0 0.0
    %219 = vmatprep.subr.mxu0 0.0
    %220 = vmatpush1.msra.mxu0 0.0
    %221 = vmatprep.subr.mxu0 0.0
    %222 = vmatpush1.msra.mxu0 0.0
    %223 = vmatprep.subr.mxu0 0.0
    %224 = vmatpush1.msra.mxu0 0.0
    %225 = vmatprep.subr.mxu0 0.0
    %226 = vmatpush1.msra.mxu0 0.0
    %227 = vmatprep.subr.mxu0 0.0
    %228 = vmatpush1.msra.mxu0 0.0
    %229 = vmatprep.subr.mxu0 0.0
    %230 = vmatpush1.msra.mxu0 0.0
    %231 = vmatprep.subr.mxu0 0.0
    %232 = vmatpush1.msra.mxu0 0.0
    %233 = vmatprep.subr.mxu0 0.0
    %234 = vmatpush1.msra.mxu0 0.0
    %235 = vmatprep.subr.mxu0 0.0
    %236 = vmatpush1.msra.mxu0 0.0
    %237 = vmatprep.subr.mxu0 0.0
    %238 = vmatpush1.msra.mxu0 0.0
    %239 = vmatprep.subr.mxu0 0.0
    %240 = vmatpush1.msra.mxu0 0.0
    %241 = vmatprep.subr.mxu0 0.0
    %242 = vmatpush1.msra.mxu0 %v211
    %243 = vmatprep.subr.mxu0 0.0
    %244 = vmatpush1.msra.mxu0 %v196
    %245 = vmatprep.subr.mxu0 0.0
    %246 = vmatpush2.msra.mxu0 0.0
    %247 = vmatprep.subr.mxu0 0.0
    %248 = vmatpush2.msra.mxu0 0.0
    %249 = vmatprep.subr.mxu0 0.0
    %250 = vmatpush2.msra.mxu0 0.0
    %251 = vmatprep.subr.mxu0 0.0
    %252 = vmatpush2.msra.mxu0 0.0
    %253 = vmatprep.subr.mxu0 0.0
    %254 = vmatpush2.msra.mxu0 0.0
    %255 = vmatprep.subr.mxu0 0.0
    %256 = vmatpush2.msra.mxu0 0.0
    %257 = vmatprep.subr.mxu0 0.0
    %258 = vmatpush2.msra.mxu0 0.0
    %259 = vmatprep.subr.mxu0 0.0
    %260 = vmatpush2.msra.mxu0 0.0
    %261 = vmatprep.subr.mxu0 0.0
    %262 = vmatpush2.msra.mxu0 0.0
    %263 = vmatprep.subr.mxu0 0.0
    %264 = vmatpush2.msra.mxu0 0.0
    %265 = vmatprep.subr.mxu0 0.0
    %266 = vmatpush2.msra.mxu0 0.0
    %267 = vmatprep.subr.mxu0 0.0
    %268 = vmatpush2.msra.mxu0 0.0
    %269 = vmatprep.subr.mxu0 0.0
    %270 = vmatpush2.msra.mxu0 0.0
    %271 = vmatprep.subr.mxu0 0.0
    %272 = vmatpush2.msra.mxu0 0.0
    %273 = vmatprep.subr.mxu0 0.0
    %274 = vmatpush2.msra.mxu0 0.0
    %275 = vmatprep.subr.mxu0 0.0
    %276 = vmatpush2.msra.mxu0 0.0
    %277 = vmatprep.mubr.f32.mxu0 0.0
    %278 = vmatmul.mubr.f32.gmra.mxu0 %v207
    %v279 = vpop.f32.mrf.mxu0
    %v280 = vadd.f32 %v203, %v279
    %v281 = vpop.f32.mrf.mxu0
    %282 = vdwg.mxu0
    %283 = vst [vmem:[#allocation2] sm:$0xff] %v280
    // Predicated region
    $region34: #{tpu_custom_call.1} parent=1 // pred_check
      _
    $region35: #{tpu_custom_call.1} parent=1 // pred_check_branch
      %285 = sbr.rel (0) target = $region37
    $region36: #{tpu_custom_call.1} parent=1 // pred_region
      %s287 = ssub.s32 128, 64
      %288 = vsyncadd [#allocation3], %s287
      %s289 = sshll.u32 [#allocation2], 4
      %s290 = int_to_ptr.vmem [resolvable:$true] %s289
      %295 = dma.vmem_to_hbm [thread:$0]  %s290, 64, %s6, [#allocation3], 64, 64, 4
    $region37: #{tpu_custom_call.1} parent=1 // pred_fallthru
      _
    // Predicated region
    $region38: #{tpu_custom_call.1} parent=1 // pred_check
      _
    $region39: #{tpu_custom_call.1} parent=1 // pred_check_branch
      %297 = sbr.rel (0) target = $region41
    $region40: #{tpu_custom_call.1} parent=1 // pred_region
      %s299 = ssub.s32 16, 16
      %300 = vsyncadd [#allocation5], %s299
      %s302 = sshll.u32 [#allocation4], 4
      %s303 = int_to_ptr.vmem [resolvable:$true] %s302
      %305 = dma.vmem_to_hbm [thread:$0]  %s303, 16, %s7, [#allocation5]
    $region41: #{tpu_custom_call.1} parent=1 // pred_fallthru
      _
    // Predicated region
    $region42: #{tpu_custom_call.1} parent=1 // pred_check
      _
    $region43: #{tpu_custom_call.1} parent=1 // pred_check_branch
      %307 = sbr.rel (0) target = $region45
    $region44: #{tpu_custom_call.1} parent=1 // pred_region
      %308 = dma.done [#allocation3], 128
    $region45: #{tpu_custom_call.1} parent=1 // pred_fallthru
      _
    // Predicated region
    $region46: #{tpu_custom_call.1} parent=1 // pred_check
      _
    $region47: #{tpu_custom_call.1} parent=1 // pred_check_branch
      %310 = sbr.rel (0) target = $region49
    $region48: #{tpu_custom_call.1} parent=1 // pred_region
      %311 = dma.done [#allocation5], 16
    $region49: #{tpu_custom_call.1} parent=1 // pred_fallthru
      _
    %312 = vsyncpa [#allocation3], 1
    %313 = vsyncpa [#allocation5], 1

</llo_original>
